<compile_context>
chip_gen: v5e
topology: v5e:2x2
jax: 0.10.0
libtpu: 0.0.40
codegen_flags: <defaults>
</compile_context>

<pallas_src>
import functools

import jax
import jax.numpy as jnp
from jax.experimental import pallas as pl
from jax.experimental.pallas import tpu as pltpu


def _round_up(x, m):
    return (x + m - 1) // m * m


# Scoped-VMEM budget: safe on v7x (64 MiB / TensorCore) and v5e/v6e (128 MiB).
_VMEM_LIMIT_BYTES = 48 * 1024 * 1024


def _vmem_bytes_estimate(tb, d_pad, h_pad, n_blk):
    """Rough per-grid-step VMEM footprint (bytes) used to auto-shrink the tile."""
    in_tile = 2 * tb * d_pad * 2               # bf16 input tile, double-buffered
    out_tile = 2 * tb * 4                      # f32 (1, TB) output tile, double-buffered
    weights = n_blk * 2 * d_pad * h_pad * 2    # stacked bf16 W1 + W2 (single-buffered)
    biases = n_blk * (h_pad + d_pad) * 4 + 8 * d_pad * 2
    temps = 4 * tb * max(d_pad, h_pad) * 4     # f32 x / h / y / logits live values
    return in_tile + out_tile + weights + biases + temps


def deep_crossing_kernel(stack_ref, w1_ref, b1_ref, w2_ref, b2_ref,
                         wf_ref, bf_ref, out_ref):
    """Residual stack + final linear + sigmoid on one (TB, D_pad) batch tile.

    stack_ref : (TB, D_pad)            bf16   zero-padded features
    w1_ref    : (n_blk, D_pad, H_pad)  bf16
    b1_ref    : (n_blk, 1, H_pad)      f32
    w2_ref    : (n_blk, H_pad, D_pad)  bf16
    b2_ref    : (n_blk, 1, D_pad)      f32
    wf_ref    : (8, D_pad)             bf16   final Linear weight in row 0, rows 1..7 zero
    bf_ref    : (1, 1)                 f32    SMEM scalar (final bias)
    out_ref   : (1, TB)                f32    lane-dense sigmoid(logits)
    """
    x_bf = stack_ref[...]                          # bf16 (TB, D_pad)
    x = x_bf.astype(jnp.float32)                   # f32 residual carrier
    n_blocks = w1_ref.shape[0]

    # Residual blocks: x = relu(W2(W1 x + b1) + b2 + x).
    # MXU work in bf16 with f32 accumulation; bias/residual/ReLU in f32.
    for blk in range(n_blocks):                    # static, unrolled at trace time
        lhs = x_bf if blk == 0 else x.astype(jnp.bfloat16)   # reuse bf16 input on block 0
        h = jnp.dot(lhs, w1_ref[blk], preferred_element_type=jnp.float32) + b1_ref[blk]
        y = jnp.dot(h.astype(jnp.bfloat16), w2_ref[blk],
                    preferred_element_type=jnp.float32) + b2_ref[blk]
        x = jnp.maximum(y + x, 0.0)

    # TODO(synk): nn.Dropout is treated as identity (inference / eval mode).

    # Final Linear(dim_stack, 1): compute wf @ x^T on the MXU so the per-row
    # logits land lane-dense (padded wf lanes are zero; rows 1..7 of wf are zero).
    logits8 = jax.lax.dot_general(
        wf_ref[...], x.astype(jnp.bfloat16),
        dimension_numbers=(((1,), (1,)), ((), ())),          # contract D_pad of both
        preferred_element_type=jnp.float32)                   # (8, TB)
    logit = logits8[0:1, :] + bf_ref[0, 0]                    # (1, TB)
    out_ref[...] = jax.nn.sigmoid(logit)


@functools.partial(jax.jit, static_argnames=("tile_b",))
def deep_crossing_forward(dense_input, sparse_input, packed, *, tile_b=4096):
    """Full DeepCrossing forward using the packed (padded, stacked) parameters.

    dense_input : (B, n_dense)  f32
    sparse_input: (B, n_sparse) i32
    """
    B, n_dense = dense_input.shape
    n_sparse = sparse_input.shape[1]
    n_blk, D_pad, H_pad = packed["w1"].shape
    embed_dim = packed["embed"][0].shape[1]
    dim_stack = n_dense + n_sparse * embed_dim

    # ---- batch tiling --------------------------------------------------------
    b16 = _round_up(B, 16)
    if b16 < 256:
        TB = b16                                   # single full-height tile (grid == 1)
    else:
        TB = _round_up(max(tile_b, 128), 128)
        # >= 2 grid steps so v7x's two TensorCores both get work ("parallel" axis).
        TB = min(TB, max(128, (b16 // 2) // 128 * 128))
        # Keep the derived VMEM footprint comfortably inside the scoped limit
        # (matters on v7x's 64 MiB VMEM when tiles / dims grow).
        while TB > 128 and _vmem_bytes_estimate(TB, D_pad, H_pad, n_blk) > int(0.75 * _VMEM_LIMIT_BYTES):
            TB = max(128, (TB // 2) // 128 * 128)
    B_pad = _round_up(b16, TB)
    grid = (B_pad // TB,)

    # ---- glue in plain JAX: bf16 embedding gathers + single padded concat ----
    # Builds the lane-padded bf16 slab directly (no f32 concat -> pad -> cast).
    # TODO(synk): at production batch sizes, fuse this gather into the kernel via
    # PrefetchScalarGridSpec to avoid the extra HBM round trip of `stack_p`.
    parts = [dense_input.astype(jnp.bfloat16)]
    parts += [packed["embed"][i][sparse_input[:, i]] for i in range(n_sparse)]
    if D_pad > dim_stack:
        parts.append(jnp.zeros((B, D_pad - dim_stack), jnp.bfloat16))
    stack_p = jnp.concatenate(parts, axis=1)                        # (B, D_pad) bf16
    if B_pad > B:
        stack_p = jnp.concatenate(
            [stack_p, jnp.zeros((B_pad - B, D_pad), jnp.bfloat16)], axis=0)

    const3 = lambda i: (0, 0, 0)
    const2 = lambda i: (0, 0)
    single = pl.Buffered(1)        # constant-index operands: no double buffer
    in_specs = [
        pl.BlockSpec((TB, D_pad), lambda i: (i, 0)),                          # stack tile
        pl.BlockSpec(packed["w1"].shape, const3, pipeline_mode=single),       # stacked W1
        pl.BlockSpec(packed["b1"].shape, const3, pipeline_mode=single),       # stacked b1
        pl.BlockSpec(packed["w2"].shape, const3, pipeline_mode=single),       # stacked W2
        pl.BlockSpec(packed["b2"].shape, const3, pipeline_mode=single),       # stacked b2
        pl.BlockSpec(packed["wf8"].shape, const2, pipeline_mode=single),      # final weight
        pl.BlockSpec(memory_space=pltpu.MemorySpace.SMEM),                    # final bias
    ]
    out_specs = pl.BlockSpec((1, TB), lambda i: (0, i))             # lane-dense output

    out = pl.pallas_call(
        deep_crossing_kernel,
        out_shape=jax.ShapeDtypeStruct((1, B_pad), jnp.float32),
        grid=grid,
        in_specs=in_specs,
        out_specs=out_specs,
        compiler_params=pltpu.CompilerParams(
            dimension_semantics=("parallel",),
            vmem_limit_bytes=_VMEM_LIMIT_BYTES,
        ),
    )(stack_p, packed["w1"], packed["b1"], packed["w2"], packed["b2"],
      packed["wf8"], packed["bf"])

    # outputs.squeeze(): drop padded batch entries and the size-1 dim.
    return out[0, :B]


def init_params(key, n_dense, sparse_feat_nums, embed_dim, hidden_units):
    """Deterministic synthetic parameter init (nn.Linear stored as (in, out))."""
    dim_stack = n_dense + len(sparse_feat_nums) * embed_dim
    keys = jax.random.split(key, 3 + 4 * len(hidden_units) + len(sparse_feat_nums))
    ki = iter(keys)

    embed = [0.1 * jax.random.normal(next(ki), (n, embed_dim), jnp.float32)
             for n in sparse_feat_nums]

    w1, b1, w2, b2 = [], [], [], []
    for h in hidden_units:
        w1.append(0.1 * jax.random.normal(next(ki), (dim_stack, h), jnp.float32))
        b1.append(0.01 * jax.random.normal(next(ki), (1, h), jnp.float32))
        w2.append(0.1 * jax.random.normal(next(ki), (h, dim_stack), jnp.float32))
        b2.append(0.01 * jax.random.normal(next(ki), (1, dim_stack), jnp.float32))

    wf = 0.1 * jax.random.normal(next(ki), (dim_stack, 1), jnp.float32)
    bf = 0.01 * jax.random.normal(next(ki), (1, 1), jnp.float32)

    return {"embed": embed, "w1": w1, "b1": b1, "w2": w2, "b2": b2,
            "wf": wf, "bf": bf}, dim_stack


def pack_params(raw, dim_stack, hidden_units):
    """Zero-pad feature/hidden dims to 128 lanes, stack per-block weights, cast
    matmul operands (W1/W2/wf, embedding tables) to bf16; biases stay f32.

    Zero padding is inert: padded W1 rows, W2 output columns, b2 entries and wf
    entries are exactly zero, so the residual add, ReLU and the final logits in
    the pad region contribute nothing.
    NOTE: dims round to 128-multiples; if production dim_stack/hidden land just
    above 128, consider padding to 256 on v6e/v7x (256-wide MXU) but keep 128
    multiples on v5e (4x128^2 MXU).
    """
    n_blocks = len(hidden_units)
    d_pad = _round_up(dim_stack, 128)
    h_pad = _round_up(max(hidden_units), 128)

    w1 = jnp.zeros((n_blocks, d_pad, h_pad), jnp.float32)
    b1 = jnp.zeros((n_blocks, 1, h_pad), jnp.float32)
    w2 = jnp.zeros((n_blocks, h_pad, d_pad), jnp.float32)
    b2 = jnp.zeros((n_blocks, 1, d_pad), jnp.float32)
    for i, h in enumerate(hidden_units):
        w1 = w1.at[i, :dim_stack, :h].set(raw["w1"][i])
        b1 = b1.at[i, 0, :h].set(raw["b1"][i][0])
        w2 = w2.at[i, :h, :dim_stack].set(raw["w2"][i])
        b2 = b2.at[i, 0, :dim_stack].set(raw["b2"][i][0])

    # Final Linear weight lives in row 0 of an (8, d_pad) slab (rows 1..7 zero)
    # so the in-kernel wf @ x^T matmul has an MXU-friendly 8-row LHS.
    wf8 = jnp.zeros((8, d_pad), jnp.float32).at[0, :dim_stack].set(raw["wf"][:, 0])
    bf = raw["bf"].reshape(1, 1).astype(jnp.float32)

    return {
        "embed": [e.astype(jnp.bfloat16) for e in raw["embed"]],
        "w1": w1.astype(jnp.bfloat16), "b1": b1,
        "w2": w2.astype(jnp.bfloat16), "b2": b2,
        "wf8": wf8.astype(jnp.bfloat16), "bf": bf,
    }


def reference_forward(dense_input, sparse_input, raw):
    """Pure-JAX f32 reference matching the PyTorch forward (eval mode)."""
    sparse_embeds = [raw["embed"][i][sparse_input[:, i]]
                     for i in range(sparse_input.shape[1])]
    x = jnp.concatenate([dense_input] + sparse_embeds, axis=1).astype(jnp.float32)
    for i in range(len(raw["w1"])):
        h = x @ raw["w1"][i] + raw["b1"][i]
        y = h @ raw["w2"][i] + raw["b2"][i]
        x = jnp.maximum(y + x, 0.0)
    # dropout = identity at eval
    return jnp.squeeze(jax.nn.sigmoid(x @ raw["wf"] + raw["bf"]), axis=-1)


if __name__ == "__main__":
    # Small shapes consistent with the module's forward:
    #   dense_input: (B, n_dense) f32, sparse_input: (B, n_sparse) int indices.
    n_dense = 4
    sparse_feat_nums = [10, 20, 15]     # feat['feat_num'] per sparse feature
    embed_dim = 8
    hidden_units = [32, 16]             # two Residual blocks

    key = jax.random.PRNGKey(0)
    k_params, k_dense, k_sparse = jax.random.split(key, 3)

    raw, dim_stack = init_params(k_params, n_dense, sparse_feat_nums,
                                 embed_dim, hidden_units)
    packed = pack_params(raw, dim_stack, hidden_units)

    # Exercise both the single-tile path (B=8) and the multi-tile grid path (B=512).
    for case, B in (("single_tile", 8), ("tiled", 512)):
        kd = jax.random.fold_in(k_dense, B)
        ks = jax.random.fold_in(k_sparse, B)
        dense_input = jax.random.normal(kd, (B, n_dense), jnp.float32)
        sparse_input = jnp.stack(
            [jax.random.randint(jax.random.fold_in(ks, i), (B,), 0, n)
             for i, n in enumerate(sparse_feat_nums)], axis=1).astype(jnp.int32)

        out = deep_crossing_forward(dense_input, sparse_input, packed)
        out = jax.block_until_ready(out)

        ref = reference_forward(dense_input, sparse_input, raw)
        assert out.shape == (B,), (case, out.shape)
        # bf16 matmul operands (f32 accumulation) => slightly relaxed tolerance.
        assert jnp.allclose(out, ref, atol=1e-2, rtol=1e-2), (case, out, ref)

    print("KERNEL_OK")
</pallas_src>

<mosaic_0001>
module attributes {stable_mosaic.version = 11 : i64} {
  func.func @deep_crossing_kernel(%arg0: i32, %arg1: memref<16x128xbf16, #tpu.memory_space<vmem>>, %arg2: memref<2x128x128xbf16, #tpu.memory_space<vmem>>, %arg3: memref<2x1x128xf32, #tpu.memory_space<vmem>>, %arg4: memref<2x128x128xbf16, #tpu.memory_space<vmem>>, %arg5: memref<2x1x128xf32, #tpu.memory_space<vmem>>, %arg6: memref<8x128xbf16, #tpu.memory_space<vmem>>, %arg7: memref<1x1xf32, #tpu.memory_space<smem>>, %arg8: memref<1x16xf32, #tpu.memory_space<vmem>>) attributes {dimension_semantics = [#tpu.dimension_semantics<parallel>], iteration_bounds = array<i64: 1>, scalar_prefetch = 0 : i64, scratch_operands = 0 : i64, tpu.core_type = #tpu.core_type<tc>, window_params = [{transform_indices = @transform_0, window_bounds = array<i64: 16, 128>}, {pipeline_mode = #tpu.pipeline_mode<synchronous>, transform_indices = @transform_1, window_bounds = array<i64: 2, 128, 128>}, {pipeline_mode = #tpu.pipeline_mode<synchronous>, transform_indices = @transform_2, window_bounds = array<i64: 2, 1, 128>}, {pipeline_mode = #tpu.pipeline_mode<synchronous>, transform_indices = @transform_3, window_bounds = array<i64: 2, 128, 128>}, {pipeline_mode = #tpu.pipeline_mode<synchronous>, transform_indices = @transform_4, window_bounds = array<i64: 2, 1, 128>}, {pipeline_mode = #tpu.pipeline_mode<synchronous>, transform_indices = @transform_5, window_bounds = array<i64: 8, 128>}, {transform_indices = @transform_6, window_bounds = array<i64: 1, 1>}, {transform_indices = @transform_7, window_bounds = array<i64: 1, 16>}]} {
    %c0 = arith.constant 0 : index
    %c0_0 = arith.constant 0 : index
    %0 = vector.load %arg1[%c0, %c0_0] : memref<16x128xbf16, #tpu.memory_space<vmem>>, vector<16x128xbf16>
    %1 = arith.extf %0 : vector<16x128xbf16> to vector<16x128xf32>
    %c0_1 = arith.constant 0 : index
    %c0_2 = arith.constant 0 : index
    %c0_3 = arith.constant 0 : index
    %2 = vector.load %arg2[%c0_1, %c0_2, %c0_3] : memref<2x128x128xbf16, #tpu.memory_space<vmem>>, vector<1x128x128xbf16>
    %3 = vector.shape_cast %2 : vector<1x128x128xbf16> to vector<128x128xbf16>
    %cst = arith.constant dense<0.000000e+00> : vector<16x128xf32>
    %4 = tpu.matmul %0, %3, %cst {dimension_numbers = #tpu.dot_dimension_numbers<[1], [0], [0], [1], [0, 0, 1, 1], [], []>} : vector<16x128xbf16>, vector<128x128xbf16>, vector<16x128xf32> -> vector<16x128xf32>
    %c0_4 = arith.constant 0 : index
    %c0_5 = arith.constant 0 : index
    %c0_6 = arith.constant 0 : index
    %5 = vector.load %arg3[%c0_4, %c0_5, %c0_6] : memref<2x1x128xf32, #tpu.memory_space<vmem>>, vector<1x1x128xf32>
    %6 = vector.shape_cast %5 : vector<1x1x128xf32> to vector<1x128xf32>
    %7 = vector.broadcast %6 : vector<1x128xf32> to vector<16x128xf32>
    %8 = arith.addf %4, %7 : vector<16x128xf32>
    %9 = arith.truncf %8 : vector<16x128xf32> to vector<16x128xbf16>
    %c0_7 = arith.constant 0 : index
    %c0_8 = arith.constant 0 : index
    %c0_9 = arith.constant 0 : index
    %10 = vector.load %arg4[%c0_7, %c0_8, %c0_9] : memref<2x128x128xbf16, #tpu.memory_space<vmem>>, vector<1x128x128xbf16>
    %11 = vector.shape_cast %10 : vector<1x128x128xbf16> to vector<128x128xbf16>
    %cst_10 = arith.constant dense<0.000000e+00> : vector<16x128xf32>
    %12 = tpu.matmul %9, %11, %cst_10 {dimension_numbers = #tpu.dot_dimension_numbers<[1], [0], [0], [1], [0, 0, 1, 1], [], []>} : vector<16x128xbf16>, vector<128x128xbf16>, vector<16x128xf32> -> vector<16x128xf32>
    %c0_11 = arith.constant 0 : index
    %c0_12 = arith.constant 0 : index
    %c0_13 = arith.constant 0 : index
    %13 = vector.load %arg5[%c0_11, %c0_12, %c0_13] : memref<2x1x128xf32, #tpu.memory_space<vmem>>, vector<1x1x128xf32>
    %14 = vector.shape_cast %13 : vector<1x1x128xf32> to vector<1x128xf32>
    %15 = vector.broadcast %14 : vector<1x128xf32> to vector<16x128xf32>
    %16 = arith.addf %12, %15 : vector<16x128xf32>
    %17 = arith.addf %16, %1 : vector<16x128xf32>
    %cst_14 = arith.constant 0.000000e+00 : f32
    %18 = vector.broadcast %cst_14 : f32 to vector<16x128xf32>
    %19 = arith.maximumf %17, %18 : vector<16x128xf32>
    %20 = arith.truncf %19 : vector<16x128xf32> to vector<16x128xbf16>
    %c1 = arith.constant 1 : index
    %c0_15 = arith.constant 0 : index
    %c0_16 = arith.constant 0 : index
    %21 = vector.load %arg2[%c1, %c0_15, %c0_16] : memref<2x128x128xbf16, #tpu.memory_space<vmem>>, vector<1x128x128xbf16>
    %22 = vector.shape_cast %21 : vector<1x128x128xbf16> to vector<128x128xbf16>
    %cst_17 = arith.constant dense<0.000000e+00> : vector<16x128xf32>
    %23 = tpu.matmul %20, %22, %cst_17 {dimension_numbers = #tpu.dot_dimension_numbers<[1], [0], [0], [1], [0, 0, 1, 1], [], []>} : vector<16x128xbf16>, vector<128x128xbf16>, vector<16x128xf32> -> vector<16x128xf32>
    %c1_18 = arith.constant 1 : index
    %c0_19 = arith.constant 0 : index
    %c0_20 = arith.constant 0 : index
    %24 = vector.load %arg3[%c1_18, %c0_19, %c0_20] : memref<2x1x128xf32, #tpu.memory_space<vmem>>, vector<1x1x128xf32>
    %25 = vector.shape_cast %24 : vector<1x1x128xf32> to vector<1x128xf32>
    %26 = vector.broadcast %25 : vector<1x128xf32> to vector<16x128xf32>
    %27 = arith.addf %23, %26 : vector<16x128xf32>
    %28 = arith.truncf %27 : vector<16x128xf32> to vector<16x128xbf16>
    %c1_21 = arith.constant 1 : index
    %c0_22 = arith.constant 0 : index
    %c0_23 = arith.constant 0 : index
    %29 = vector.load %arg4[%c1_21, %c0_22, %c0_23] : memref<2x128x128xbf16, #tpu.memory_space<vmem>>, vector<1x128x128xbf16>
    %30 = vector.shape_cast %29 : vector<1x128x128xbf16> to vector<128x128xbf16>
    %cst_24 = arith.constant dense<0.000000e+00> : vector<16x128xf32>
    %31 = tpu.matmul %28, %30, %cst_24 {dimension_numbers = #tpu.dot_dimension_numbers<[1], [0], [0], [1], [0, 0, 1, 1], [], []>} : vector<16x128xbf16>, vector<128x128xbf16>, vector<16x128xf32> -> vector<16x128xf32>
    %c1_25 = arith.constant 1 : index
    %c0_26 = arith.constant 0 : index
    %c0_27 = arith.constant 0 : index
    %32 = vector.load %arg5[%c1_25, %c0_26, %c0_27] : memref<2x1x128xf32, #tpu.memory_space<vmem>>, vector<1x1x128xf32>
    %33 = vector.shape_cast %32 : vector<1x1x128xf32> to vector<1x128xf32>
    %34 = vector.broadcast %33 : vector<1x128xf32> to vector<16x128xf32>
    %35 = arith.addf %31, %34 : vector<16x128xf32>
    %36 = arith.addf %35, %19 : vector<16x128xf32>
    %cst_28 = arith.constant 0.000000e+00 : f32
    %37 = vector.broadcast %cst_28 : f32 to vector<16x128xf32>
    %38 = arith.maximumf %36, %37 : vector<16x128xf32>
    %c0_29 = arith.constant 0 : index
    %c0_30 = arith.constant 0 : index
    %39 = vector.load %arg6[%c0_29, %c0_30] : memref<8x128xbf16, #tpu.memory_space<vmem>>, vector<8x128xbf16>
    %40 = arith.truncf %38 : vector<16x128xf32> to vector<16x128xbf16>
    %cst_31 = arith.constant dense<0.000000e+00> : vector<8x16xf32>
    %41 = tpu.matmul %39, %40, %cst_31 {dimension_numbers = #tpu.dot_dimension_numbers<[1], [1], [0], [0], [0, 0, 1, 0], [], []>} : vector<8x128xbf16>, vector<16x128xbf16>, vector<8x16xf32> -> vector<8x16xf32>
    %42 = vector.extract_strided_slice %41 {offsets = [0, 0], sizes = [1, 16], strides = [1, 1]} : vector<8x16xf32> to vector<1x16xf32>
    %c0_32 = arith.constant 0 : index
    %c0_33 = arith.constant 0 : index
    %43 = memref.load %arg7[%c0_32, %c0_33] : memref<1x1xf32, #tpu.memory_space<smem>>
    %44 = vector.broadcast %43 : f32 to vector<1x16xf32>
    %45 = arith.addf %42, %44 : vector<1x16xf32>
    %46 = arith.negf %45 : vector<1x16xf32>
    %47 = math.exp %46 : vector<1x16xf32>
    %cst_34 = arith.constant 1.000000e+00 : f32
    %48 = vector.broadcast %cst_34 : f32 to vector<1x16xf32>
    %49 = arith.addf %48, %47 : vector<1x16xf32>
    %50 = arith.divf %48, %49 : vector<1x16xf32>
    %c0_35 = arith.constant 0 : index
    %c0_36 = arith.constant 0 : index
    %51 = vector.load %arg8[%c0_35, %c0_36] : memref<1x16xf32, #tpu.memory_space<vmem>>, vector<1x16xf32>
    tpu.vector_store %arg8[%c0_35, %c0_36], %50 {strides = array<i32>} : memref<1x16xf32, #tpu.memory_space<vmem>>, vector<1x16xf32>,
    return
  }
  func.func @transform_0(%arg0: i32) -> (i32, i32) {
    %c0_i32 = arith.constant 0 : i32
    %c0_i32_0 = arith.constant 0 : i32
    return %arg0, %c0_i32 : i32, i32
  }
  func.func @transform_1(%arg0: i32) -> (i32, i32, i32) {
    %c0_i32 = arith.constant 0 : i32
    %c0_i32_0 = arith.constant 0 : i32
    %c0_i32_1 = arith.constant 0 : i32
    %c0_i32_2 = arith.constant 0 : i32
    return %c0_i32, %c0_i32_0, %c0_i32_1 : i32, i32, i32
  }
  func.func @transform_2(%arg0: i32) -> (i32, i32, i32) {
    %c0_i32 = arith.constant 0 : i32
    %c0_i32_0 = arith.constant 0 : i32
    %c0_i32_1 = arith.constant 0 : i32
    %c0_i32_2 = arith.constant 0 : i32
    return %c0_i32, %c0_i32_0, %c0_i32_1 : i32, i32, i32
  }
  func.func @transform_3(%arg0: i32) -> (i32, i32, i32) {
    %c0_i32 = arith.constant 0 : i32
    %c0_i32_0 = arith.constant 0 : i32
    %c0_i32_1 = arith.constant 0 : i32
    %c0_i32_2 = arith.constant 0 : i32
    return %c0_i32, %c0_i32_0, %c0_i32_1 : i32, i32, i32
  }
  func.func @transform_4(%arg0: i32) -> (i32, i32, i32) {
    %c0_i32 = arith.constant 0 : i32
    %c0_i32_0 = arith.constant 0 : i32
    %c0_i32_1 = arith.constant 0 : i32
    %c0_i32_2 = arith.constant 0 : i32
    return %c0_i32, %c0_i32_0, %c0_i32_1 : i32, i32, i32
  }
  func.func @transform_5(%arg0: i32) -> (i32, i32) {
    %c0_i32 = arith.constant 0 : i32
    %c0_i32_0 = arith.constant 0 : i32
    %c0_i32_1 = arith.constant 0 : i32
    return %c0_i32, %c0_i32_0 : i32, i32
  }
  func.func @transform_6(%arg0: i32) -> (i32, i32) {
    %c0_i32 = arith.constant 0 : i32
    %c0_i32_0 = arith.constant 0 : i32
    %c0_i32_1 = arith.constant 0 : i32
    return %c0_i32, %c0_i32_0 : i32, i32
  }
  func.func @transform_7(%arg0: i32) -> (i32, i32) {
    %c0_i32 = arith.constant 0 : i32
    %c0_i32_0 = arith.constant 0 : i32
    return %c0_i32, %arg0 : i32, i32
  }
}

</mosaic_0001>

<llo_original>
// kernel: deep_crossing_forward.1
$region0: #{deep_crossing_forward.1}
  #allocation0 [shape = 'u32[]', space=smem, size = 0x4, offset = 0x4, fixed_abs, tag = 'smem constant byte address 0x4 - core index']
  #allocation1 [shape = 'u32[72,128]{1,0:T(1,128)}', space=vmem, size = 0x9000, scoped, tag = 'internal scratch']
  #allocation2 [shape = 'f32[1,1]{1,0:T(1,128)S(6)}', space=smem, size = 0x200, scoped, tag = 'scoped memory for deep_crossing_forward.1']
  %s0 = inlined_call_operand.vmem [shape: bf16[16,128], index: 0, kind: input, shape index: {}]
  %s1 = inlined_call_operand.hbm [shape: bf16[2,128,128], index: 1, kind: input, shape index: {}]
  %s2 = inlined_call_operand.vmem [shape: f32[2,1,128], index: 2, kind: input, shape index: {}]
  %s3 = inlined_call_operand.hbm [shape: bf16[2,128,128], index: 3, kind: input, shape index: {}]
  %s4 = inlined_call_operand.vmem [shape: f32[2,1,128], index: 4, kind: input, shape index: {}]
  %s5 = inlined_call_operand.vmem [shape: bf16[8,128], index: 5, kind: input, shape index: {}]
  %s6 = inlined_call_operand.<no memory space> [shape: f32[1,1], index: 6, kind: input, shape index: {}]
  %s7 = inlined_call_operand.vmem [shape: f32[1,16], index: 7, kind: output, shape index: {}]
  %s8 = sld [smem:[#allocation0]]
  $region46: #{deep_crossing_forward.1} parent=0
    _
  %s10 = ssub.s32 1, %s8
  %s11 = scalar_select 0, %s10, %s8
  %12 = sst [smem:[#allocation2]] %s6
  $region1: #{deep_crossing_forward.1} parent=0
    #allocation3 [shape = 'u8[65536]{0}', space=vmem, size = 0x10000, scoped, tag = 'input window, operand 1, single buffered']
    #allocation4 [shape = 's32[1]{0}', space=sflag, size = 0x4, scoped, tag = 'scoped memory for deep_crossing_forward.1']
    #allocation5 [shape = 'u8[65536]{0}', space=vmem, size = 0x10000, scoped, tag = 'input window, operand 3, single buffered']
    #allocation6 [shape = 's32[1]{0}', space=sflag, size = 0x4, scoped, tag = 'scoped memory for deep_crossing_forward.1']
    %13 = vsyncpa [#allocation4], 0
    %14 = vsyncpa [#allocation6], 0
    // Predicated region
    $region2: #{deep_crossing_forward.1} parent=1 // pred_check
      _
    $region3: #{deep_crossing_forward.1} parent=1 // pred_check_branch
      %16 = sbr.rel (0) target = $region5
    $region4: #{deep_crossing_forward.1} parent=1 // pred_region
      _
    $region5: #{deep_crossing_forward.1} parent=1 // pred_fallthru
      _
    // Predicated region
    $region6: #{deep_crossing_forward.1} parent=1 // pred_check
      _
    $region7: #{deep_crossing_forward.1} parent=1 // pred_check_branch
      %18 = sbr.rel (0) target = $region9
    $region8: #{deep_crossing_forward.1} parent=1 // pred_region
      %20 = vsyncadd [#allocation4], 0
      %s21 = sshll.u32 %s1, 4
      %s22 = int_to_ptr.hbm [resolvable:$true] %s21
      %s23 = sshll.u32 [#allocation3], 4
      %s24 = int_to_ptr.vmem [resolvable:$true] %s23
      %29 = dma.hbm_to_vmem [thread:$0]  %s22, 2048, %s24, [#allocation4], 64, 64, 4
    $region9: #{deep_crossing_forward.1} parent=1 // pred_fallthru
      _
    // Predicated region
    $region10: #{deep_crossing_forward.1} parent=1 // pred_check
      _
    $region11: #{deep_crossing_forward.1} parent=1 // pred_check_branch
      %31 = sbr.rel (0) target = $region13
    $region12: #{deep_crossing_forward.1} parent=1 // pred_region
      _
    $region13: #{deep_crossing_forward.1} parent=1 // pred_fallthru
      _
    // Predicated region
    $region14: #{deep_crossing_forward.1} parent=1 // pred_check
      _
    $region15: #{deep_crossing_forward.1} parent=1 // pred_check_branch
      %33 = sbr.rel (0) target = $region17
    $region16: #{deep_crossing_forward.1} parent=1 // pred_region
      %35 = vsyncadd [#allocation6], 0
      %s36 = sshll.u32 %s3, 4
      %s37 = int_to_ptr.hbm [resolvable:$true] %s36
      %s38 = sshll.u32 [#allocation5], 4
      %s39 = int_to_ptr.vmem [resolvable:$true] %s38
      %44 = dma.hbm_to_vmem [thread:$0]  %s37, 2048, %s39, [#allocation6], 64, 64, 4
    $region17: #{deep_crossing_forward.1} parent=1 // pred_fallthru
      _
    // Predicated region
    $region18: #{deep_crossing_forward.1} parent=1 // pred_check
      _
    $region19: #{deep_crossing_forward.1} parent=1 // pred_check_branch
      %46 = sbr.rel (0) target = $region21
    $region20: #{deep_crossing_forward.1} parent=1 // pred_region
      _
    $region21: #{deep_crossing_forward.1} parent=1 // pred_fallthru
      _
    // Predicated region
    $region22: #{deep_crossing_forward.1} parent=1 // pred_check
      _
    $region23: #{deep_crossing_forward.1} parent=1 // pred_check_branch
      %48 = sbr.rel (0) target = $region25
    $region24: #{deep_crossing_forward.1} parent=1 // pred_region
      _
    $region25: #{deep_crossing_forward.1} parent=1 // pred_fallthru
      _
    // Predicated region
    $region26: #{deep_crossing_forward.1} parent=1 // pred_check
      _
    $region27: #{deep_crossing_forward.1} parent=1 // pred_check_branch
      %50 = sbr.rel (0) target = $region29
    $region28: #{deep_crossing_forward.1} parent=1 // pred_region
      _
    $region29: #{deep_crossing_forward.1} parent=1 // pred_fallthru
      _
    // Predicated region
    $region30: #{deep_crossing_forward.1} parent=1 // pred_check
      _
    $region31: #{deep_crossing_forward.1} parent=1 // pred_check_branch
      %52 = sbr.rel (0) target = $region33
    $region32: #{deep_crossing_forward.1} parent=1 // pred_region
      %54 = dma.done [#allocation4], 2048
    $region33: #{deep_crossing_forward.1} parent=1 // pred_fallthru
      _
    // Predicated region
    $region34: #{deep_crossing_forward.1} parent=1 // pred_check
      _
    $region35: #{deep_crossing_forward.1} parent=1 // pred_check_branch
      %56 = sbr.rel (0) target = $region37
    $region36: #{deep_crossing_forward.1} parent=1 // pred_region
      %58 = dma.done [#allocation6], 2048
    $region37: #{deep_crossing_forward.1} parent=1 // pred_fallthru
      _
    %v60 = vld [vmem:[%s0] sm:$0xf]
    %v61 = vld [vmem:[%s0 + $0x4] sm:$0xf]
    %v62 = vunpack.c.l.bf16 %v60
    %v63 = vunpack.c.l.bf16 %v61
    %v64 = vld [vmem:[#allocation3] sm:$0xf]
    %v65 = vld [vmem:[#allocation3 + $0x4] sm:$0xf]
    %v66 = vld [vmem:[#allocation3 + $0x8] sm:$0xf]
    %v67 = vld [vmem:[#allocation3 + $0xc] sm:$0xf]
    %v68 = vld [vmem:[#allocation3 + $0x10] sm:$0xf]
    %v69 = vld [vmem:[#allocation3 + $0x14] sm:$0xf]
    %v70 = vld [vmem:[#allocation3 + $0x18] sm:$0xf]
    %v71 = vld [vmem:[#allocation3 + $0x1c] sm:$0xf]
    %v72 = vld [vmem:[#allocation3 + $0x20] sm:$0xf]
    %v73 = vld [vmem:[#allocation3 + $0x24] sm:$0xf]
    %v74 = vld [vmem:[#allocation3 + $0x28] sm:$0xf]
    %v75 = vld [vmem:[#allocation3 + $0x2c] sm:$0xf]
    %v76 = vld [vmem:[#allocation3 + $0x30] sm:$0xf]
    %v77 = vld [vmem:[#allocation3 + $0x34] sm:$0xf]
    %v78 = vld [vmem:[#allocation3 + $0x38] sm:$0xf]
    %v79 = vld [vmem:[#allocation3 + $0x3c] sm:$0xf]
    %v80 = vld [vmem:[%s2] sm:$0x1]
    %v82 = vperm.slane %v80, 0
    %v86 = vunpack.c.l.b16 %v60
    %v87 = vunpack.c.l.b16 %v61
    %v88 = vpack.c.b16 %v87, %v86
    %v106 = vunpack.c.l.b16 %v64
    %v107 = vunpack.c.l.b16 %v65
    %v108 = vunpack.c.l.b16 %v66
    %v109 = vunpack.c.l.b16 %v67
    %v110 = vunpack.c.l.b16 %v68
    %v111 = vunpack.c.l.b16 %v69
    %v112 = vunpack.c.l.b16 %v70
    %v113 = vunpack.c.l.b16 %v71
    %v114 = vunpack.c.l.b16 %v72
    %v115 = vunpack.c.l.b16 %v73
    %v116 = vunpack.c.l.b16 %v74
    %v117 = vunpack.c.l.b16 %v75
    %v118 = vunpack.c.l.b16 %v76
    %v119 = vunpack.c.l.b16 %v77
    %v120 = vunpack.c.l.b16 %v78
    %v121 = vunpack.c.l.b16 %v79
    %v122 = vpack.c.b16 %v107, %v106
    %v123 = vpack.c.b16 %v109, %v108
    %v124 = vpack.c.b16 %v111, %v110
    %v125 = vpack.c.b16 %v113, %v112
    %v126 = vpack.c.b16 %v115, %v114
    %v127 = vpack.c.b16 %v117, %v116
    %v128 = vpack.c.b16 %v119, %v118
    %v129 = vpack.c.b16 %v121, %v120
    %138 = vmatpush.bf16.msra.mxu0 %v129
    %139 = vmatpush.bf16.msra.mxu0 %v128
    %140 = vmatpush.bf16.msra.mxu0 %v127
    %141 = vmatpush.bf16.msra.mxu0 %v126
    %142 = vmatpush.bf16.msra.mxu0 %v125
    %143 = vmatpush.bf16.msra.mxu0 %v124
    %144 = vmatpush.bf16.msra.mxu0 %v123
    %145 = vmatpush.bf16.msra.mxu0 %v122
    %146 = vmatmul.bf16.gmra.mxu0 %v88
    %v147 = vpop.f32.mrf.mxu0
    %v148 = vadd.f32 %v82, %v147
    %v149 = vpop.f32.mrf.mxu0
    %v150 = vadd.f32 %v82, %v149
    %151 = vdwg.mxu0
    %v152 = vpack.c.bf16 %v150, %v148
    %v153 = vld [vmem:[#allocation5] sm:$0xf]
    %v154 = vld [vmem:[#allocation5 + $0x4] sm:$0xf]
    %v155 = vld [vmem:[#allocation5 + $0x8] sm:$0xf]
    %v156 = vld [vmem:[#allocation5 + $0xc] sm:$0xf]
    %v157 = vld [vmem:[#allocation5 + $0x10] sm:$0xf]
    %v158 = vld [vmem:[#allocation5 + $0x14] sm:$0xf]
    %v159 = vld [vmem:[#allocation5 + $0x18] sm:$0xf]
    %v160 = vld [vmem:[#allocation5 + $0x1c] sm:$0xf]
    %v161 = vld [vmem:[#allocation5 + $0x20] sm:$0xf]
    %v162 = vld [vmem:[#allocation5 + $0x24] sm:$0xf]
    %v163 = vld [vmem:[#allocation5 + $0x28] sm:$0xf]
    %v164 = vld [vmem:[#allocation5 + $0x2c] sm:$0xf]
    %v165 = vld [vmem:[#allocation5 + $0x30] sm:$0xf]
    %v166 = vld [vmem:[#allocation5 + $0x34] sm:$0xf]
    %v167 = vld [vmem:[#allocation5 + $0x38] sm:$0xf]
    %v168 = vld [vmem:[#allocation5 + $0x3c] sm:$0xf]
    %v169 = vld [vmem:[%s4] sm:$0x1]
    %v171 = vperm.slane %v169, 0
    %v189 = vunpack.c.l.b16 %v153
    %v190 = vunpack.c.l.b16 %v154
    %v191 = vunpack.c.l.b16 %v155
    %v192 = vunpack.c.l.b16 %v156
    %v193 = vunpack.c.l.b16 %v157
    %v194 = vunpack.c.l.b16 %v158
    %v195 = vunpack.c.l.b16 %v159
    %v196 = vunpack.c.l.b16 %v160
    %v197 = vunpack.c.l.b16 %v161
    %v198 = vunpack.c.l.b16 %v162
    %v199 = vunpack.c.l.b16 %v163
    %v200 = vunpack.c.l.b16 %v164
    %v201 = vunpack.c.l.b16 %v165
    %v202 = vunpack.c.l.b16 %v166
    %v203 = vunpack.c.l.b16 %v167
    %v204 = vunpack.c.l.b16 %v168
    %v205 = vpack.c.b16 %v190, %v189
    %v206 = vpack.c.b16 %v192, %v191
    %v207 = vpack.c.b16 %v194, %v193
    %v208 = vpack.c.b16 %v196, %v195
    %v209 = vpack.c.b16 %v198, %v197
    %v210 = vpack.c.b16 %v200, %v199
    %v211 = vpack.c.b16 %v202, %v201
    %v212 = vpack.c.b16 %v204, %v203
    %221 = vmatpush.bf16.msra.mxu0 %v212
    %222 = vmatpush.bf16.msra.mxu0 %v211
    %223 = vmatpush.bf16.msra.mxu0 %v210
    %224 = vmatpush.bf16.msra.mxu0 %v209
    %225 = vmatpush.bf16.msra.mxu0 %v208
    %226 = vmatpush.bf16.msra.mxu0 %v207
    %227 = vmatpush.bf16.msra.mxu0 %v206
    %228 = vmatpush.bf16.msra.mxu0 %v205
    %229 = vmatmul.bf16.gmra.mxu0 %v152
    %v230 = vpop.f32.mrf.mxu0
    %v231 = vadd.f32 %v171, %v230
    %v232 = vpop.f32.mrf.mxu0
    %v233 = vadd.f32 %v171, %v232
    %234 = vdwg.mxu0
    %v235 = vadd.f32 %v231, %v62
    %v236 = vadd.f32 %v233, %v63
    %v237 = vmax.f32 %v235, 0.0
    %v238 = vmax.f32 %v236, 0.0
    %v239 = vpack.c.bf16 %v238, %v237
    %s240 = scalar_lea.vmem [#allocation3], 64
    %v241 = vld [vmem:[%s240] sm:$0xf]
    %v242 = vld [vmem:[%s240 + $0x4] sm:$0xf]
    %v243 = vld [vmem:[%s240 + $0x8] sm:$0xf]
    %v244 = vld [vmem:[%s240 + $0xc] sm:$0xf]
    %v245 = vld [vmem:[%s240 + $0x10] sm:$0xf]
    %v246 = vld [vmem:[%s240 + $0x14] sm:$0xf]
    %v247 = vld [vmem:[%s240 + $0x18] sm:$0xf]
    %v248 = vld [vmem:[%s240 + $0x1c] sm:$0xf]
    %v249 = vld [vmem:[%s240 + $0x20] sm:$0xf]
    %v250 = vld [vmem:[%s240 + $0x24] sm:$0xf]
    %v251 = vld [vmem:[%s240 + $0x28] sm:$0xf]
    %v252 = vld [vmem:[%s240 + $0x2c] sm:$0xf]
    %v253 = vld [vmem:[%s240 + $0x30] sm:$0xf]
    %v254 = vld [vmem:[%s240 + $0x34] sm:$0xf]
    %v255 = vld [vmem:[%s240 + $0x38] sm:$0xf]
    %v256 = vld [vmem:[%s240 + $0x3c] sm:$0xf]
    %s257 = scalar_lea.vmem %s2, 1
    %v258 = vld [vmem:[%s257] sm:$0x1]
    %v260 = vperm.slane %v258, 0
    %v278 = vunpack.c.l.b16 %v241
    %v279 = vunpack.c.l.b16 %v242
    %v280 = vunpack.c.l.b16 %v243
    %v281 = vunpack.c.l.b16 %v244
    %v282 = vunpack.c.l.b16 %v245
    %v283 = vunpack.c.l.b16 %v246
    %v284 = vunpack.c.l.b16 %v247
    %v285 = vunpack.c.l.b16 %v248
    %v286 = vunpack.c.l.b16 %v249
    %v287 = vunpack.c.l.b16 %v250
    %v288 = vunpack.c.l.b16 %v251
    %v289 = vunpack.c.l.b16 %v252
    %v290 = vunpack.c.l.b16 %v253
    %v291 = vunpack.c.l.b16 %v254
    %v292 = vunpack.c.l.b16 %v255
    %v293 = vunpack.c.l.b16 %v256
    %v294 = vpack.c.b16 %v279, %v278
    %v295 = vpack.c.b16 %v281, %v280
    %v296 = vpack.c.b16 %v283, %v282
    %v297 = vpack.c.b16 %v285, %v284
    %v298 = vpack.c.b16 %v287, %v286
    %v299 = vpack.c.b16 %v289, %v288
    %v300 = vpack.c.b16 %v291, %v290
    %v301 = vpack.c.b16 %v293, %v292
    %310 = vmatpush.bf16.msra.mxu0 %v301
    %311 = vmatpush.bf16.msra.mxu0 %v300
    %312 = vmatpush.bf16.msra.mxu0 %v299
    %313 = vmatpush.bf16.msra.mxu0 %v298
    %314 = vmatpush.bf16.msra.mxu0 %v297
    %315 = vmatpush.bf16.msra.mxu0 %v296
    %316 = vmatpush.bf16.msra.mxu0 %v295
    %317 = vmatpush.bf16.msra.mxu0 %v294
    %318 = vmatmul.bf16.gmra.mxu0 %v239
    %v319 = vpop.f32.mrf.mxu0
    %v320 = vadd.f32 %v260, %v319
    %v321 = vpop.f32.mrf.mxu0
    %v322 = vadd.f32 %v260, %v321
    %323 = vdwg.mxu0
    %v324 = vpack.c.bf16 %v322, %v320
    %s325 = scalar_lea.vmem [#allocation5], 64
    %v326 = vld [vmem:[%s325] sm:$0xf]
    %v327 = vld [vmem:[%s325 + $0x4] sm:$0xf]
    %v328 = vld [vmem:[%s325 + $0x8] sm:$0xf]
    %v329 = vld [vmem:[%s325 + $0xc] sm:$0xf]
    %v330 = vld [vmem:[%s325 + $0x10] sm:$0xf]
    %v331 = vld [vmem:[%s325 + $0x14] sm:$0xf]
    %v332 = vld [vmem:[%s325 + $0x18] sm:$0xf]
    %v333 = vld [vmem:[%s325 + $0x1c] sm:$0xf]
    %v334 = vld [vmem:[%s325 + $0x20] sm:$0xf]
    %v335 = vld [vmem:[%s325 + $0x24] sm:$0xf]
    %v336 = vld [vmem:[%s325 + $0x28] sm:$0xf]
    %v337 = vld [vmem:[%s325 + $0x2c] sm:$0xf]
    %v338 = vld [vmem:[%s325 + $0x30] sm:$0xf]
    %v339 = vld [vmem:[%s325 + $0x34] sm:$0xf]
    %v340 = vld [vmem:[%s325 + $0x38] sm:$0xf]
    %v341 = vld [vmem:[%s325 + $0x3c] sm:$0xf]
    %s342 = scalar_lea.vmem %s4, 1
    %v343 = vld [vmem:[%s342] sm:$0x1]
    %v345 = vperm.slane %v343, 0
    %v363 = vunpack.c.l.b16 %v326
    %v364 = vunpack.c.l.b16 %v327
    %v365 = vunpack.c.l.b16 %v328
    %v366 = vunpack.c.l.b16 %v329
    %v367 = vunpack.c.l.b16 %v330
    %v368 = vunpack.c.l.b16 %v331
    %v369 = vunpack.c.l.b16 %v332
    %v370 = vunpack.c.l.b16 %v333
    %v371 = vunpack.c.l.b16 %v334
    %v372 = vunpack.c.l.b16 %v335
    %v373 = vunpack.c.l.b16 %v336
    %v374 = vunpack.c.l.b16 %v337
    %v375 = vunpack.c.l.b16 %v338
    %v376 = vunpack.c.l.b16 %v339
    %v377 = vunpack.c.l.b16 %v340
    %v378 = vunpack.c.l.b16 %v341
    %v379 = vpack.c.b16 %v364, %v363
    %v380 = vpack.c.b16 %v366, %v365
    %v381 = vpack.c.b16 %v368, %v367
    %v382 = vpack.c.b16 %v370, %v369
    %v383 = vpack.c.b16 %v372, %v371
    %v384 = vpack.c.b16 %v374, %v373
    %v385 = vpack.c.b16 %v376, %v375
    %v386 = vpack.c.b16 %v378, %v377
    %395 = vmatpush.bf16.msra.mxu0 %v386
    %396 = vmatpush.bf16.msra.mxu0 %v385
    %397 = vmatpush.bf16.msra.mxu0 %v384
    %398 = vmatpush.bf16.msra.mxu0 %v383
    %399 = vmatpush.bf16.msra.mxu0 %v382
    %400 = vmatpush.bf16.msra.mxu0 %v381
    %401 = vmatpush.bf16.msra.mxu0 %v380
    %402 = vmatpush.bf16.msra.mxu0 %v379
    %403 = vmatmul.bf16.gmra.mxu0 %v324
    %v404 = vpop.f32.mrf.mxu0
    %v405 = vadd.f32 %v345, %v404
    %v406 = vpop.f32.mrf.mxu0
    %v407 = vadd.f32 %v345, %v406
    %408 = vdwg.mxu0
    %v409 = vadd.f32 %v405, %v237
    %v410 = vadd.f32 %v407, %v238
    %v411 = vmax.f32 %v409, 0.0
    %v412 = vmax.f32 %v410, 0.0
    %v413 = vld [vmem:[%s5] sm:$0xf]
    %v414 = vpack.c.bf16 %v412, %v411
    %415 = vmatpush.bf16.xpose.msra.mxu0 0
    %416 = vmatpush.bf16.xpose.msra.mxu0 0
    %417 = vmatpush.bf16.xpose.msra.mxu0 0
    %418 = vmatpush.bf16.xpose.msra.mxu0 0
    %419 = vmatpush.bf16.xpose.msra.mxu0 0
    %420 = vmatpush.bf16.xpose.msra.mxu0 0
    %421 = vmatpush.bf16.xpose.msra.mxu0 0
    %422 = vmatpush.bf16.xpose.msra.mxu0 %v414
    %423 = vmatmul.bf16.gmra.mxu0 %v413
    %v424 = vpop.f32.mrf.mxu0
    %v425 = vadd.f32 0.0, %v424
    %v426 = vpop.f32.mrf.mxu0
    %427 = vdwg.mxu0
    %s428 = sld [smem:[#allocation2]]
    %v429 = vstv %s428
    %v430 = vadd.f32 %v425, %v429
    %v431 = vxor.u32 %v430, 2147483648
    %v432 = vmul.f32 %v431, 1.442695
    %v433 = vpow.pop %v432
    %v434 = vadd.f32 %v433, 1.0
    %v435 = vrcp.pop %v434
    %v436 = vmul.f32 %v434, %v435
    %v437 = vsub.f32 1.0, %v436
    %v438 = vmul.f32 %v435, %v437
    %v439 = vadd.f32 %v435, %v438
    %vm440 = vweird.f32 %v434
    %vm441 = vweird.f32 %v435
    %vm442 = vmor %vm440, %vm441
    %v443 = vsel %vm442, %v435, %v439
    %v444 = vand.u32 2147483647, %v434
    %vm445 = vcmp.eq.f32.partialorder %v444, 8.507059e+37
    %v446 = vand.u32 %v434, 2147483648
    %v447 = vor.u32 1.1754944e-38, %v446
    %v448 = vsel %vm445, %v447, %v443
    %v449 = vmul.f32 1.0, %v448
    %vm450 = vcmask 122880
    %451 = vst.msk [vmem:[%s7] sm:$0x1] %vm450, %v449
    // Predicated region
    $region38: #{deep_crossing_forward.1} parent=1 // pred_check
      _
    $region39: #{deep_crossing_forward.1} parent=1 // pred_check_branch
      %453 = sbr.rel (0) target = $region41
    $region40: #{deep_crossing_forward.1} parent=1 // pred_region
      _
    $region41: #{deep_crossing_forward.1} parent=1 // pred_fallthru
      _
    // Predicated region
    $region42: #{deep_crossing_forward.1} parent=1 // pred_check
      _
    $region43: #{deep_crossing_forward.1} parent=1 // pred_check_branch
      %455 = sbr.rel (0) target = $region45
    $region44: #{deep_crossing_forward.1} parent=1 // pred_region
      _
    $region45: #{deep_crossing_forward.1} parent=1 // pred_fallthru
      _
    %456 = vsyncpa [#allocation4], 1
    %457 = vsyncpa [#allocation6], 1

</llo_original>
